<compile_context>
chip_gen: v6e
topology: v6e:2x2x1
jax: 0.10.0
libtpu: 0.0.40
codegen_flags: <defaults>
</compile_context>

<pallas_src>
import jax
import jax.numpy as jnp
from jax.experimental import pallas as pl
from jax.experimental.pallas import tpu as pltpu


def _pipeline_kernel(x_ref, w_ref, b_ref, o_ref):
    """All S pipeline stages in one invocation; weights fully VMEM-resident."""
    n_stages = w_ref.shape[0]
    h = x_ref[...].astype(jnp.bfloat16)            # carried activation (= args)
    acc = None
    for s in range(n_stages):                      # static unroll, S is tiny
        acc = jnp.dot(h, w_ref[s],                 # bf16 MXU, f32 accumulate
                      preferred_element_type=jnp.float32)
        acc = acc + b_ref[s:s + 1, :]              # [1, H] f32 bias, broadcasts
        if s != n_stages - 1:                      # ReLU on all but last stage
            h = jnp.maximum(acc, 0.0).astype(jnp.bfloat16)
    o_ref[...] = acc.astype(o_ref.dtype)           # result = args[0]


def rpc_model_forward(x, weights_bf16, biases):
    """x: [B, H] f32, weights_bf16: [S, H, H] bf16 (pre-cast at init),
    biases: [S, H] f32  ->  [B, H] (x.dtype)."""
    B, H = x.shape
    S = weights_bf16.shape[0]

    # Resident-weight VMEM guard (v7x has 32 MiB default scoped / 64 MiB phys).
    resident_bytes = (weights_bf16.size * weights_bf16.dtype.itemsize
                      + biases.size * biases.dtype.itemsize
                      + 2 * B * H * 4)
    assert resident_bytes < 28 * (1 << 20), (
        "weight slab too large for resident-VMEM path; switch to the tiled "
        "grid=(S, N//tn, K//tk) form (see TODO above)")

    vmem = pltpu.MemorySpace.VMEM
    return pl.pallas_call(
        _pipeline_kernel,
        out_shape=jax.ShapeDtypeStruct((B, H), x.dtype),
        in_specs=[
            pl.BlockSpec(memory_space=vmem),       # model input   [B, H]
            pl.BlockSpec(memory_space=vmem),       # stage weights [S, H, H] bf16
            pl.BlockSpec(memory_space=vmem),       # stage biases  [S, H] f32
        ],
        out_specs=pl.BlockSpec(memory_space=vmem),
    )(x, weights_bf16, biases)


def reference_forward(x, weights_bf16, biases):
    """Pure-JAX reference of the same sequential pipeline (same bf16 params).
    Note: bf16 params differ numerically from an f32 PyTorch RpcModel; the
    reference applies the identical cast so the comparison is apples-to-apples."""
    S = weights_bf16.shape[0]
    h = x.astype(jnp.bfloat16)
    acc = None
    for s in range(S):
        acc = jnp.dot(h, weights_bf16[s],
                      preferred_element_type=jnp.float32) + biases[s]
        if s != S - 1:
            h = jnp.maximum(acc, 0.0).astype(jnp.bfloat16)
    return acc.astype(x.dtype)


if __name__ == "__main__":
    # Synthetic worker pool of 3 stages (rank 0 local + 2 remote workers),
    # each stage a Linear(H, H).  Deterministic init, no checkpoint loading.
    # TODO(synk): RPC-specific behavior (RpcRef.to_here, parameter_rrefs) has
    # no on-device equivalent and is intentionally not modeled.
    B, H, S = 8, 128, 3

    key = jax.random.PRNGKey(0)
    kx, kw, kb = jax.random.split(key, 3)
    x = jax.random.normal(kx, (B, H), dtype=jnp.float32)
    # Parameters: cast to bf16 ONCE at init ("stored" bf16 params), not per call.
    weights_bf16 = (jax.random.normal(kw, (S, H, H), dtype=jnp.float32)
                    * (1.0 / jnp.sqrt(H))).astype(jnp.bfloat16)
    biases = jax.random.normal(kb, (S, H), dtype=jnp.float32) * 0.01

    out = jax.block_until_ready(rpc_model_forward(x, weights_bf16, biases))
    ref = reference_forward(x, weights_bf16, biases)

    assert out.shape == (B, H), out.shape
    assert jnp.allclose(out, ref, atol=2e-2, rtol=2e-2), "mismatch vs reference"
    print("KERNEL_OK")
</pallas_src>

<mosaic_0001>
module attributes {stable_mosaic.version = 11 : i64} {
  func.func @_pipeline_kernel(%arg0: memref<8x128xf32, #tpu.memory_space<vmem>>, %arg1: memref<3x128x128xbf16, #tpu.memory_space<vmem>>, %arg2: memref<3x128xf32, #tpu.memory_space<vmem>>, %arg3: memref<8x128xf32, #tpu.memory_space<vmem>>) attributes {dimension_semantics = [], scalar_prefetch = 0 : i64, scratch_operands = 0 : i64, tpu.core_type = #tpu.core_type<tc>} {
    %c0 = arith.constant 0 : index
    %c0_0 = arith.constant 0 : index
    %0 = vector.load %arg0[%c0, %c0_0] : memref<8x128xf32, #tpu.memory_space<vmem>>, vector<8x128xf32>
    %1 = arith.truncf %0 : vector<8x128xf32> to vector<8x128xbf16>
    %c0_1 = arith.constant 0 : index
    %c0_2 = arith.constant 0 : index
    %c0_3 = arith.constant 0 : index
    %2 = vector.load %arg1[%c0_1, %c0_2, %c0_3] : memref<3x128x128xbf16, #tpu.memory_space<vmem>>, vector<1x128x128xbf16>
    %3 = vector.shape_cast %2 : vector<1x128x128xbf16> to vector<128x128xbf16>
    %cst = arith.constant dense<0.000000e+00> : vector<8x128xf32>
    %4 = tpu.matmul %1, %3, %cst {dimension_numbers = #tpu.dot_dimension_numbers<[1], [0], [0], [1], [0, 0, 1, 1], [], []>} : vector<8x128xbf16>, vector<128x128xbf16>, vector<8x128xf32> -> vector<8x128xf32>
    %c0_4 = arith.constant 0 : index
    %c0_5 = arith.constant 0 : index
    %5 = vector.load %arg2[%c0_4, %c0_5] : memref<3x128xf32, #tpu.memory_space<vmem>>, vector<1x128xf32>
    %6 = vector.broadcast %5 : vector<1x128xf32> to vector<8x128xf32>
    %7 = arith.addf %4, %6 : vector<8x128xf32>
    %cst_6 = arith.constant 0.000000e+00 : f32
    %8 = vector.broadcast %cst_6 : f32 to vector<8x128xf32>
    %9 = arith.maximumf %7, %8 : vector<8x128xf32>
    %10 = arith.truncf %9 : vector<8x128xf32> to vector<8x128xbf16>
    %c1 = arith.constant 1 : index
    %c0_7 = arith.constant 0 : index
    %c0_8 = arith.constant 0 : index
    %11 = vector.load %arg1[%c1, %c0_7, %c0_8] : memref<3x128x128xbf16, #tpu.memory_space<vmem>>, vector<1x128x128xbf16>
    %12 = vector.shape_cast %11 : vector<1x128x128xbf16> to vector<128x128xbf16>
    %cst_9 = arith.constant dense<0.000000e+00> : vector<8x128xf32>
    %13 = tpu.matmul %10, %12, %cst_9 {dimension_numbers = #tpu.dot_dimension_numbers<[1], [0], [0], [1], [0, 0, 1, 1], [], []>} : vector<8x128xbf16>, vector<128x128xbf16>, vector<8x128xf32> -> vector<8x128xf32>
    %c1_10 = arith.constant 1 : index
    %c0_11 = arith.constant 0 : index
    %14 = vector.load %arg2[%c1_10, %c0_11] : memref<3x128xf32, #tpu.memory_space<vmem>>, vector<1x128xf32>
    %15 = vector.broadcast %14 : vector<1x128xf32> to vector<8x128xf32>
    %16 = arith.addf %13, %15 : vector<8x128xf32>
    %cst_12 = arith.constant 0.000000e+00 : f32
    %17 = vector.broadcast %cst_12 : f32 to vector<8x128xf32>
    %18 = arith.maximumf %16, %17 : vector<8x128xf32>
    %19 = arith.truncf %18 : vector<8x128xf32> to vector<8x128xbf16>
    %c2 = arith.constant 2 : index
    %c0_13 = arith.constant 0 : index
    %c0_14 = arith.constant 0 : index
    %20 = vector.load %arg1[%c2, %c0_13, %c0_14] : memref<3x128x128xbf16, #tpu.memory_space<vmem>>, vector<1x128x128xbf16>
    %21 = vector.shape_cast %20 : vector<1x128x128xbf16> to vector<128x128xbf16>
    %cst_15 = arith.constant dense<0.000000e+00> : vector<8x128xf32>
    %22 = tpu.matmul %19, %21, %cst_15 {dimension_numbers = #tpu.dot_dimension_numbers<[1], [0], [0], [1], [0, 0, 1, 1], [], []>} : vector<8x128xbf16>, vector<128x128xbf16>, vector<8x128xf32> -> vector<8x128xf32>
    %c2_16 = arith.constant 2 : index
    %c0_17 = arith.constant 0 : index
    %23 = vector.load %arg2[%c2_16, %c0_17] : memref<3x128xf32, #tpu.memory_space<vmem>>, vector<1x128xf32>
    %24 = vector.broadcast %23 : vector<1x128xf32> to vector<8x128xf32>
    %25 = arith.addf %22, %24 : vector<8x128xf32>
    %c0_18 = arith.constant 0 : index
    %c0_19 = arith.constant 0 : index
    %26 = vector.load %arg3[%c0_18, %c0_19] : memref<8x128xf32, #tpu.memory_space<vmem>>, vector<8x128xf32>
    tpu.vector_store %arg3[%c0_18, %c0_19], %25 {strides = array<i32>} : memref<8x128xf32, #tpu.memory_space<vmem>>, vector<8x128xf32>,
    return
  }
}

</mosaic_0001>

<llo_original>
// kernel: tpu_custom_call.1
$region0: #{tpu_custom_call.1}
  #allocation0 [shape = 'u32[]', space=smem, size = 0x4, offset = 0x4, fixed_abs, tag = 'smem constant byte address 0x4 - core index']
  #allocation1 [shape = 'u32[144,128]{1,0:T(1,128)}', space=vmem, size = 0x12000, scoped, tag = 'internal scratch']
  %s0 = inlined_call_operand.hbm [shape: f32[8,128], index: 0, kind: input, shape index: {}]
  %s1 = inlined_call_operand.hbm [shape: bf16[3,128,128], index: 1, kind: input, shape index: {}]
  %s2 = inlined_call_operand.hbm [shape: f32[3,128], index: 2, kind: input, shape index: {}]
  %s3 = inlined_call_operand.hbm [shape: f32[8,128], index: 3, kind: output, shape index: {}]
  %s4 = sld [smem:[#allocation0]]
  $region34: #{tpu_custom_call.1} parent=0
    _
  %s6 = ssub.s32 1, %s4
  %s7 = scalar_select 0, %s6, %s4
  $region1: #{tpu_custom_call.1} parent=0
    #allocation2 [shape = 'u8[4096]{0}', space=vmem, size = 0x1000, scoped, tag = 'input window, operand 0, single buffered']
    #allocation3 [shape = 's32[1]{0}', space=sflag, size = 0x4, scoped, tag = 'scoped memory for tpu_custom_call.1']
    #allocation4 [shape = 's32[1]{0}', space=sflag, size = 0x4, scoped, tag = 'scoped memory for tpu_custom_call.1']
    #allocation5 [shape = 'u8[98304]{0}', space=vmem, size = 0x18000, scoped, tag = 'input window, operand 1, single buffered']
    #allocation6 [shape = 's32[1]{0}', space=sflag, size = 0x4, scoped, tag = 'scoped memory for tpu_custom_call.1']
    #allocation7 [shape = 'u8[2048]{0}', space=vmem, size = 0x800, scoped, tag = 'input window, operand 2, single buffered']
    #allocation8 [shape = 'u8[4096]{0}', space=vmem, size = 0x1000, scoped, tag = 'output window, operand 0, single buffered']
    %8 = vsyncpa [#allocation3], 0
    %9 = vsyncpa [#allocation6], 0
    %10 = vsyncpa [#allocation4], 0
    // Predicated region
    $region2: #{tpu_custom_call.1} parent=1 // pred_check
      _
    $region3: #{tpu_custom_call.1} parent=1 // pred_check_branch
      %12 = sbr.rel (0) target = $region5
    $region4: #{tpu_custom_call.1} parent=1 // pred_region
      %s14 = ssub.s32 128, 128
      %15 = vsyncadd [#allocation3], %s14
      %s17 = sshll.u32 [#allocation2], 4
      %s18 = int_to_ptr.vmem [resolvable:$true] %s17
      %20 = dma.hbm_to_vmem [thread:$0]  %s0, 128, %s18, [#allocation3]
    $region5: #{tpu_custom_call.1} parent=1 // pred_fallthru
      _
    // Predicated region
    $region6: #{tpu_custom_call.1} parent=1 // pred_check
      _
    $region7: #{tpu_custom_call.1} parent=1 // pred_check_branch
      %22 = sbr.rel (0) target = $region9
    $region8: #{tpu_custom_call.1} parent=1 // pred_region
      %s24 = ssub.s32 3072, 3072
      %25 = vsyncadd [#allocation6], %s24
      %s26 = sshll.u32 [#allocation5], 4
      %s27 = int_to_ptr.vmem [resolvable:$true] %s26
      %32 = dma.hbm_to_vmem [thread:$0]  %s1, 3072, %s27, [#allocation6], 64, 64, 4
    $region9: #{tpu_custom_call.1} parent=1 // pred_fallthru
      _
    // Predicated region
    $region10: #{tpu_custom_call.1} parent=1 // pred_check
      _
    $region11: #{tpu_custom_call.1} parent=1 // pred_check_branch
      %34 = sbr.rel (0) target = $region13
    $region12: #{tpu_custom_call.1} parent=1 // pred_region
      %s36 = ssub.s32 64, 64
      %37 = vsyncadd [#allocation6], %s36
      %s39 = sshll.u32 [#allocation7], 4
      %s40 = int_to_ptr.vmem [resolvable:$true] %s39
      %42 = dma.hbm_to_vmem [thread:$0]  %s2, 64, %s40, [#allocation6]
    $region13: #{tpu_custom_call.1} parent=1 // pred_fallthru
      _
    // Predicated region
    $region14: #{tpu_custom_call.1} parent=1 // pred_check
      _
    $region15: #{tpu_custom_call.1} parent=1 // pred_check_branch
      %44 = sbr.rel (0) target = $region17
    $region16: #{tpu_custom_call.1} parent=1 // pred_region
      %45 = dma.done [#allocation3], 128
    $region17: #{tpu_custom_call.1} parent=1 // pred_fallthru
      _
    // Predicated region
    $region18: #{tpu_custom_call.1} parent=1 // pred_check
      _
    $region19: #{tpu_custom_call.1} parent=1 // pred_check_branch
      %47 = sbr.rel (0) target = $region21
    $region20: #{tpu_custom_call.1} parent=1 // pred_region
      %48 = dma.done [#allocation6], 3072
    $region21: #{tpu_custom_call.1} parent=1 // pred_fallthru
      _
    // Predicated region
    $region22: #{tpu_custom_call.1} parent=1 // pred_check
      _
    $region23: #{tpu_custom_call.1} parent=1 // pred_check_branch
      %50 = sbr.rel (0) target = $region25
    $region24: #{tpu_custom_call.1} parent=1 // pred_region
      %51 = dma.done [#allocation6], 64
    $region25: #{tpu_custom_call.1} parent=1 // pred_fallthru
      _
    %v53 = vld [vmem:[#allocation2] sm:$0xff]
    %v54 = vpack.c.bf16 %v53, %v53
    %v55 = vld [vmem:[#allocation5] sm:$0xf]
    %v56 = vld [vmem:[#allocation5 + $0x4] sm:$0xf]
    %v57 = vld [vmem:[#allocation5 + $0x8] sm:$0xf]
    %v58 = vld [vmem:[#allocation5 + $0xc] sm:$0xf]
    %v59 = vld [vmem:[#allocation5 + $0x10] sm:$0xf]
    %v60 = vld [vmem:[#allocation5 + $0x14] sm:$0xf]
    %v61 = vld [vmem:[#allocation5 + $0x18] sm:$0xf]
    %v62 = vld [vmem:[#allocation5 + $0x1c] sm:$0xf]
    %v63 = vld [vmem:[#allocation5 + $0x20] sm:$0xf]
    %v64 = vld [vmem:[#allocation5 + $0x24] sm:$0xf]
    %v65 = vld [vmem:[#allocation5 + $0x28] sm:$0xf]
    %v66 = vld [vmem:[#allocation5 + $0x2c] sm:$0xf]
    %v67 = vld [vmem:[#allocation5 + $0x30] sm:$0xf]
    %v68 = vld [vmem:[#allocation5 + $0x34] sm:$0xf]
    %v69 = vld [vmem:[#allocation5 + $0x38] sm:$0xf]
    %v70 = vld [vmem:[#allocation5 + $0x3c] sm:$0xf]
    %v71 = vld [vmem:[#allocation7] sm:$0x1]
    %v72 = vlaneseq
    %v73 = vshrl.u32 %v72, 7
    %v74 = vsub.s32 0, %v73
    %v75 = vrot.slane %v71, %v74
    %v92 = vunpack.c.l.b16 %v55
    %v93 = vunpack.c.l.b16 %v56
    %v94 = vunpack.c.l.b16 %v57
    %v95 = vunpack.c.l.b16 %v58
    %v96 = vunpack.c.l.b16 %v59
    %v97 = vunpack.c.l.b16 %v60
    %v98 = vunpack.c.l.b16 %v61
    %v99 = vunpack.c.l.b16 %v62
    %v100 = vunpack.c.l.b16 %v63
    %v101 = vunpack.c.l.b16 %v64
    %v102 = vunpack.c.l.b16 %v65
    %v103 = vunpack.c.l.b16 %v66
    %v104 = vunpack.c.l.b16 %v67
    %v105 = vunpack.c.l.b16 %v68
    %v106 = vunpack.c.l.b16 %v69
    %v107 = vunpack.c.l.b16 %v70
    %v108 = vpack.c.b16 %v93, %v92
    %v109 = vpack.c.b16 %v95, %v94
    %v110 = vpack.c.b16 %v97, %v96
    %v111 = vpack.c.b16 %v99, %v98
    %v112 = vpack.c.b16 %v101, %v100
    %v113 = vpack.c.b16 %v103, %v102
    %v114 = vpack.c.b16 %v105, %v104
    %v115 = vpack.c.b16 %v107, %v106
    %124 = vmatprep.subr.bf16.mxu0 0
    %125 = vmatpush1.bf16.msra.mxu0 %v115
    %126 = vmatprep.subr.bf16.mxu0 0
    %127 = vmatpush1.bf16.msra.mxu0 %v114
    %128 = vmatprep.subr.bf16.mxu0 0
    %129 = vmatpush1.bf16.msra.mxu0 %v113
    %130 = vmatprep.subr.bf16.mxu0 0
    %131 = vmatpush1.bf16.msra.mxu0 %v112
    %132 = vmatprep.subr.bf16.mxu0 0
    %133 = vmatpush1.bf16.msra.mxu0 %v111
    %134 = vmatprep.subr.bf16.mxu0 0
    %135 = vmatpush1.bf16.msra.mxu0 %v110
    %136 = vmatprep.subr.bf16.mxu0 0
    %137 = vmatpush1.bf16.msra.mxu0 %v109
    %138 = vmatprep.subr.bf16.mxu0 0
    %139 = vmatpush1.bf16.msra.mxu0 %v108
    %140 = vmatprep.subr.bf16.mxu0 0
    %141 = vmatpush2.bf16.msra.mxu0 0
    %142 = vmatprep.subr.bf16.mxu0 0
    %143 = vmatpush2.bf16.msra.mxu0 0
    %144 = vmatprep.subr.bf16.mxu0 0
    %145 = vmatpush2.bf16.msra.mxu0 0
    %146 = vmatprep.subr.bf16.mxu0 0
    %147 = vmatpush2.bf16.msra.mxu0 0
    %148 = vmatprep.subr.bf16.mxu0 0
    %149 = vmatpush2.bf16.msra.mxu0 0
    %150 = vmatprep.subr.bf16.mxu0 0
    %151 = vmatpush2.bf16.msra.mxu0 0
    %152 = vmatprep.subr.bf16.mxu0 0
    %153 = vmatpush2.bf16.msra.mxu0 0
    %154 = vmatprep.subr.bf16.mxu0 0
    %155 = vmatpush2.bf16.msra.mxu0 0
    %156 = vmatprep.mubr.bf16.mxu0 0
    %157 = vmatmul.mubr.bf16.gmra.mxu0 %v54
    %v158 = vpop.f32.mrf.mxu0
    %v159 = vadd.f32 %v75, %v158
    %v160 = vpop.f32.mrf.mxu0
    %v161 = vpop.f32.mrf.mxu0
    %v162 = vpop.f32.mrf.mxu0
    %163 = vdwg.mxu0
    %v164 = vmax.f32 %v159, 0.0
    %v165 = vpack.c.bf16 %v164, %v164
    %s166 = scalar_lea.vmem [#allocation5], 64
    %v167 = vld [vmem:[%s166] sm:$0xf]
    %v168 = vld [vmem:[%s166 + $0x4] sm:$0xf]
    %v169 = vld [vmem:[%s166 + $0x8] sm:$0xf]
    %v170 = vld [vmem:[%s166 + $0xc] sm:$0xf]
    %v171 = vld [vmem:[%s166 + $0x10] sm:$0xf]
    %v172 = vld [vmem:[%s166 + $0x14] sm:$0xf]
    %v173 = vld [vmem:[%s166 + $0x18] sm:$0xf]
    %v174 = vld [vmem:[%s166 + $0x1c] sm:$0xf]
    %v175 = vld [vmem:[%s166 + $0x20] sm:$0xf]
    %v176 = vld [vmem:[%s166 + $0x24] sm:$0xf]
    %v177 = vld [vmem:[%s166 + $0x28] sm:$0xf]
    %v178 = vld [vmem:[%s166 + $0x2c] sm:$0xf]
    %v179 = vld [vmem:[%s166 + $0x30] sm:$0xf]
    %v180 = vld [vmem:[%s166 + $0x34] sm:$0xf]
    %v181 = vld [vmem:[%s166 + $0x38] sm:$0xf]
    %v182 = vld [vmem:[%s166 + $0x3c] sm:$0xf]
    %v183 = vld [vmem:[#allocation7 + $0x1] sm:$0x1]
    %v184 = vlaneseq
    %v185 = vshrl.u32 %v184, 7
    %v186 = vsub.s32 0, %v185
    %v187 = vrot.slane %v183, %v186
    %v204 = vunpack.c.l.b16 %v167
    %v205 = vunpack.c.l.b16 %v168
    %v206 = vunpack.c.l.b16 %v169
    %v207 = vunpack.c.l.b16 %v170
    %v208 = vunpack.c.l.b16 %v171
    %v209 = vunpack.c.l.b16 %v172
    %v210 = vunpack.c.l.b16 %v173
    %v211 = vunpack.c.l.b16 %v174
    %v212 = vunpack.c.l.b16 %v175
    %v213 = vunpack.c.l.b16 %v176
    %v214 = vunpack.c.l.b16 %v177
    %v215 = vunpack.c.l.b16 %v178
    %v216 = vunpack.c.l.b16 %v179
    %v217 = vunpack.c.l.b16 %v180
    %v218 = vunpack.c.l.b16 %v181
    %v219 = vunpack.c.l.b16 %v182
    %v220 = vpack.c.b16 %v205, %v204
    %v221 = vpack.c.b16 %v207, %v206
    %v222 = vpack.c.b16 %v209, %v208
    %v223 = vpack.c.b16 %v211, %v210
    %v224 = vpack.c.b16 %v213, %v212
    %v225 = vpack.c.b16 %v215, %v214
    %v226 = vpack.c.b16 %v217, %v216
    %v227 = vpack.c.b16 %v219, %v218
    %236 = vmatprep.subr.bf16.mxu0 0
    %237 = vmatpush1.bf16.msra.mxu0 %v227
    %238 = vmatprep.subr.bf16.mxu0 0
    %239 = vmatpush1.bf16.msra.mxu0 %v226
    %240 = vmatprep.subr.bf16.mxu0 0
    %241 = vmatpush1.bf16.msra.mxu0 %v225
    %242 = vmatprep.subr.bf16.mxu0 0
    %243 = vmatpush1.bf16.msra.mxu0 %v224
    %244 = vmatprep.subr.bf16.mxu0 0
    %245 = vmatpush1.bf16.msra.mxu0 %v223
    %246 = vmatprep.subr.bf16.mxu0 0
    %247 = vmatpush1.bf16.msra.mxu0 %v222
    %248 = vmatprep.subr.bf16.mxu0 0
    %249 = vmatpush1.bf16.msra.mxu0 %v221
    %250 = vmatprep.subr.bf16.mxu0 0
    %251 = vmatpush1.bf16.msra.mxu0 %v220
    %252 = vmatprep.subr.bf16.mxu0 0
    %253 = vmatpush2.bf16.msra.mxu0 0
    %254 = vmatprep.subr.bf16.mxu0 0
    %255 = vmatpush2.bf16.msra.mxu0 0
    %256 = vmatprep.subr.bf16.mxu0 0
    %257 = vmatpush2.bf16.msra.mxu0 0
    %258 = vmatprep.subr.bf16.mxu0 0
    %259 = vmatpush2.bf16.msra.mxu0 0
    %260 = vmatprep.subr.bf16.mxu0 0
    %261 = vmatpush2.bf16.msra.mxu0 0
    %262 = vmatprep.subr.bf16.mxu0 0
    %263 = vmatpush2.bf16.msra.mxu0 0
    %264 = vmatprep.subr.bf16.mxu0 0
    %265 = vmatpush2.bf16.msra.mxu0 0
    %266 = vmatprep.subr.bf16.mxu0 0
    %267 = vmatpush2.bf16.msra.mxu0 0
    %268 = vmatprep.mubr.bf16.mxu0 0
    %269 = vmatmul.mubr.bf16.gmra.mxu0 %v165
    %v270 = vpop.f32.mrf.mxu0
    %v271 = vadd.f32 %v187, %v270
    %v272 = vpop.f32.mrf.mxu0
    %v273 = vpop.f32.mrf.mxu0
    %v274 = vpop.f32.mrf.mxu0
    %275 = vdwg.mxu0
    %v276 = vmax.f32 %v271, 0.0
    %v277 = vpack.c.bf16 %v276, %v276
    %s278 = scalar_lea.vmem [#allocation5], 128
    %v279 = vld [vmem:[%s278] sm:$0xf]
    %v280 = vld [vmem:[%s278 + $0x4] sm:$0xf]
    %v281 = vld [vmem:[%s278 + $0x8] sm:$0xf]
    %v282 = vld [vmem:[%s278 + $0xc] sm:$0xf]
    %v283 = vld [vmem:[%s278 + $0x10] sm:$0xf]
    %v284 = vld [vmem:[%s278 + $0x14] sm:$0xf]
    %v285 = vld [vmem:[%s278 + $0x18] sm:$0xf]
    %v286 = vld [vmem:[%s278 + $0x1c] sm:$0xf]
    %v287 = vld [vmem:[%s278 + $0x20] sm:$0xf]
    %v288 = vld [vmem:[%s278 + $0x24] sm:$0xf]
    %v289 = vld [vmem:[%s278 + $0x28] sm:$0xf]
    %v290 = vld [vmem:[%s278 + $0x2c] sm:$0xf]
    %v291 = vld [vmem:[%s278 + $0x30] sm:$0xf]
    %v292 = vld [vmem:[%s278 + $0x34] sm:$0xf]
    %v293 = vld [vmem:[%s278 + $0x38] sm:$0xf]
    %v294 = vld [vmem:[%s278 + $0x3c] sm:$0xf]
    %v295 = vld [vmem:[#allocation7 + $0x2] sm:$0x1]
    %v296 = vlaneseq
    %v297 = vshrl.u32 %v296, 7
    %v298 = vsub.s32 0, %v297
    %v299 = vrot.slane %v295, %v298
    %v316 = vunpack.c.l.b16 %v279
    %v317 = vunpack.c.l.b16 %v280
    %v318 = vunpack.c.l.b16 %v281
    %v319 = vunpack.c.l.b16 %v282
    %v320 = vunpack.c.l.b16 %v283
    %v321 = vunpack.c.l.b16 %v284
    %v322 = vunpack.c.l.b16 %v285
    %v323 = vunpack.c.l.b16 %v286
    %v324 = vunpack.c.l.b16 %v287
    %v325 = vunpack.c.l.b16 %v288
    %v326 = vunpack.c.l.b16 %v289
    %v327 = vunpack.c.l.b16 %v290
    %v328 = vunpack.c.l.b16 %v291
    %v329 = vunpack.c.l.b16 %v292
    %v330 = vunpack.c.l.b16 %v293
    %v331 = vunpack.c.l.b16 %v294
    %v332 = vpack.c.b16 %v317, %v316
    %v333 = vpack.c.b16 %v319, %v318
    %v334 = vpack.c.b16 %v321, %v320
    %v335 = vpack.c.b16 %v323, %v322
    %v336 = vpack.c.b16 %v325, %v324
    %v337 = vpack.c.b16 %v327, %v326
    %v338 = vpack.c.b16 %v329, %v328
    %v339 = vpack.c.b16 %v331, %v330
    %348 = vmatprep.subr.bf16.mxu0 0
    %349 = vmatpush1.bf16.msra.mxu0 %v339
    %350 = vmatprep.subr.bf16.mxu0 0
    %351 = vmatpush1.bf16.msra.mxu0 %v338
    %352 = vmatprep.subr.bf16.mxu0 0
    %353 = vmatpush1.bf16.msra.mxu0 %v337
    %354 = vmatprep.subr.bf16.mxu0 0
    %355 = vmatpush1.bf16.msra.mxu0 %v336
    %356 = vmatprep.subr.bf16.mxu0 0
    %357 = vmatpush1.bf16.msra.mxu0 %v335
    %358 = vmatprep.subr.bf16.mxu0 0
    %359 = vmatpush1.bf16.msra.mxu0 %v334
    %360 = vmatprep.subr.bf16.mxu0 0
    %361 = vmatpush1.bf16.msra.mxu0 %v333
    %362 = vmatprep.subr.bf16.mxu0 0
    %363 = vmatpush1.bf16.msra.mxu0 %v332
    %364 = vmatprep.subr.bf16.mxu0 0
    %365 = vmatpush2.bf16.msra.mxu0 0
    %366 = vmatprep.subr.bf16.mxu0 0
    %367 = vmatpush2.bf16.msra.mxu0 0
    %368 = vmatprep.subr.bf16.mxu0 0
    %369 = vmatpush2.bf16.msra.mxu0 0
    %370 = vmatprep.subr.bf16.mxu0 0
    %371 = vmatpush2.bf16.msra.mxu0 0
    %372 = vmatprep.subr.bf16.mxu0 0
    %373 = vmatpush2.bf16.msra.mxu0 0
    %374 = vmatprep.subr.bf16.mxu0 0
    %375 = vmatpush2.bf16.msra.mxu0 0
    %376 = vmatprep.subr.bf16.mxu0 0
    %377 = vmatpush2.bf16.msra.mxu0 0
    %378 = vmatprep.subr.bf16.mxu0 0
    %379 = vmatpush2.bf16.msra.mxu0 0
    %380 = vmatprep.mubr.bf16.mxu0 0
    %381 = vmatmul.mubr.bf16.gmra.mxu0 %v277
    %v382 = vpop.f32.mrf.mxu0
    %v383 = vadd.f32 %v299, %v382
    %v384 = vpop.f32.mrf.mxu0
    %v385 = vpop.f32.mrf.mxu0
    %v386 = vpop.f32.mrf.mxu0
    %387 = vdwg.mxu0
    %388 = vst [vmem:[#allocation8] sm:$0xff] %v383
    // Predicated region
    $region26: #{tpu_custom_call.1} parent=1 // pred_check
      _
    $region27: #{tpu_custom_call.1} parent=1 // pred_check_branch
      %390 = sbr.rel (0) target = $region29
    $region28: #{tpu_custom_call.1} parent=1 // pred_region
      %s392 = ssub.s32 128, 128
      %393 = vsyncadd [#allocation4], %s392
      %s395 = sshll.u32 [#allocation8], 4
      %s396 = int_to_ptr.vmem [resolvable:$true] %s395
      %398 = dma.vmem_to_hbm [thread:$0]  %s396, 128, %s3, [#allocation4]
    $region29: #{tpu_custom_call.1} parent=1 // pred_fallthru
      _
    // Predicated region
    $region30: #{tpu_custom_call.1} parent=1 // pred_check
      _
    $region31: #{tpu_custom_call.1} parent=1 // pred_check_branch
      %400 = sbr.rel (0) target = $region33
    $region32: #{tpu_custom_call.1} parent=1 // pred_region
      %401 = dma.done [#allocation4], 128
    $region33: #{tpu_custom_call.1} parent=1 // pred_fallthru
      _
    %402 = vsyncpa [#allocation3], 1
    %403 = vsyncpa [#allocation6], 1
    %404 = vsyncpa [#allocation4], 1

</llo_original>
